<compile_context>
chip_gen: v7x
topology: tpu7x:2x2x1
jax: 0.10.0
libtpu: 0.0.40
codegen_flags: <defaults>
</compile_context>

<pallas_src>
import jax
import jax.numpy as jnp
from jax.experimental import pallas as pl
from jax.experimental.pallas import tpu as pltpu


_LANE = 128
_SUBLANE = 8
_TB_MAX = 4096   # batch-tile ceiling: per-step footprint stays well under the
                 # default scoped-VMEM limit on v5e/v6e/v7x


def _round_up(x, m):
    return (x + m - 1) // m * m


def _mlp_kernel(t_ref, tc_ref,
                w1t_ref, w1tc_ref, b1_ref,
                w2_ref, b2_ref, w3_ref, b3_ref, o_ref):
    # Fused "concat + Linear1": x = [t | theta | control], W1 split row-wise.
    # The t column is rank-1 -> VPU broadcast-multiply; the merged theta/control
    # block is one bf16 MXU pass with f32 accumulation.
    h1 = (t_ref[...] * w1t_ref[...]
          + jnp.dot(tc_ref[...].astype(jnp.bfloat16), w1tc_ref[...],
                    preferred_element_type=jnp.float32)
          + b1_ref[...])
    h1 = jnp.maximum(h1, 0.0)                                          # ReLU
    h2 = jnp.dot(h1.astype(jnp.bfloat16), w2_ref[...],
                 preferred_element_type=jnp.float32) + b2_ref[...]
    h2 = jnp.maximum(h2, 0.0)                                          # ReLU
    # Full 128-lane MXU pass on padded W3, then store only the real columns.
    h3 = jnp.dot(h2.astype(jnp.bfloat16), w3_ref[...],
                 preferred_element_type=jnp.float32)
    d_out = o_ref.shape[-1]
    o_ref[...] = (h3[:, :d_out] + b3_ref[...]).astype(o_ref.dtype)


def blackbox_refinement_net(t, theta_hat, control, params):
    """Forward pass. t: (B,) or (B,1); theta_hat: (B, dim_theta); control: (B, control_dim)."""
    t2 = jnp.reshape(t, (-1, 1)).astype(jnp.float32)
    theta_hat = theta_hat.astype(jnp.float32)
    control = control.astype(jnp.float32)

    B = t2.shape[0]
    dt = theta_hat.shape[1]
    dc = control.shape[1]
    dtc = dt + dc

    w1, b1 = params["w1"], params["b1"]
    w2, b2 = params["w2"], params["b2"]
    w3, b3 = params["w3"], params["b3"]
    H = w1.shape[1]
    d_out = w3.shape[1]

    # Row-split W1 so the concat fuses into the kernel; bf16 MXU operands.
    w1_t = w1[:1].astype(jnp.float32)          # rank-1 term stays f32 on the VPU
    w1_tc = w1[1:].astype(jnp.bfloat16)        # (dt+dc, H)
    w2b = w2.astype(jnp.bfloat16)
    w3_pad = _round_up(d_out, _LANE)
    w3b = jnp.pad(w3, ((0, 0), (0, w3_pad - d_out))).astype(jnp.bfloat16)

    # Merge theta_hat / control into one operand (single MXU pass, one DMA stream).
    tc = jnp.concatenate([theta_hat, control], axis=1)   # (B, dt+dc)

    # Batch tiling: aim for >=4 grid steps (pipelining + v7x dual-TC) while
    # capping the tile; weights stay VMEM-resident across steps.
    b_aligned = _round_up(B, _SUBLANE)
    tb = min(_TB_MAX, max(_SUBLANE, _round_up(-(-b_aligned // 4), _SUBLANE)))
    b_pad = _round_up(b_aligned, tb)
    pad_rows = b_pad - B
    if pad_rows:
        t2 = jnp.pad(t2, ((0, pad_rows), (0, 0)))
        tc = jnp.pad(tc, ((0, pad_rows), (0, 0)))

    def batch_spec(width):
        return pl.BlockSpec((tb, width), lambda i: (i, 0))

    def const_spec(shape):
        return pl.BlockSpec(shape, lambda i: (0, 0))

    flops = 2 * b_pad * H * (1 + dtc + H + w3_pad)
    bytes_accessed = (4 * b_pad * (1 + dtc)                       # inputs (f32)
                      + 4 * b_pad * d_out                         # output (f32, unpadded)
                      + 2 * (dtc * H + H * H + H * w3_pad)        # bf16 weights
                      + 4 * (2 * H + d_out + H))                  # f32 biases + t row
    cost = pl.CostEstimate(flops=int(flops), transcendentals=0,
                           bytes_accessed=int(bytes_accessed))

    out = pl.pallas_call(
        _mlp_kernel,
        out_shape=jax.ShapeDtypeStruct((b_pad, d_out), jnp.float32),
        grid=(b_pad // tb,),
        in_specs=[
            batch_spec(1),               # t
            batch_spec(dtc),             # [theta_hat | control]
            const_spec((1, H)),          # W1 row for t (f32)
            const_spec((dtc, H)),        # W1 rows for theta/control (bf16)
            const_spec((1, H)),          # b1
            const_spec((H, H)),          # W2 (bf16)
            const_spec((1, H)),          # b2
            const_spec((H, w3_pad)),     # W3 (bf16, lane-padded for the MXU)
            const_spec((1, d_out)),      # b3 (unpadded)
        ],
        out_specs=pl.BlockSpec((tb, d_out), lambda i: (i, 0)),
        compiler_params=pltpu.CompilerParams(
            dimension_semantics=("parallel",),   # v7x: shard batch tiles across 2 TCs
        ),
        cost_estimate=cost,
    )(t2, tc, w1_t, w1_tc, b1, w2b, b2, w3b, b3)

    return out[:B]


def init_params(key, dim_theta=4, control_dim=16, hidden_dim=128):
    """Deterministic init mimicking nn.Linear's uniform(-1/sqrt(fan_in), 1/sqrt(fan_in))."""
    input_dim = 1 + dim_theta + control_dim
    ks = jax.random.split(key, 6)

    def lin(kw, kb, fan_in, fan_out):
        bound = 1.0 / jnp.sqrt(jnp.float32(fan_in))
        # stored as (in, out): transpose of PyTorch's (out, in)
        w = jax.random.uniform(kw, (fan_in, fan_out), jnp.float32, -bound, bound)
        b = jax.random.uniform(kb, (1, fan_out), jnp.float32, -bound, bound)
        return w, b

    w1, b1 = lin(ks[0], ks[1], input_dim, hidden_dim)
    w2, b2 = lin(ks[2], ks[3], hidden_dim, hidden_dim)
    w3, b3 = lin(ks[4], ks[5], hidden_dim, dim_theta)
    return {"w1": w1, "b1": b1, "w2": w2, "b2": b2, "w3": w3, "b3": b3}


def _reference(t, theta_hat, control, params):
    x = jnp.concatenate([jnp.reshape(t, (-1, 1)), theta_hat, control], axis=1)
    h = jnp.maximum(x @ params["w1"] + params["b1"], 0.0)
    h = jnp.maximum(h @ params["w2"] + params["b2"], 0.0)
    return h @ params["w3"] + params["b3"]


if __name__ == "__main__":
    dim_theta, control_dim, hidden_dim = 4, 16, 128

    key = jax.random.PRNGKey(0)
    k_param, k_t, k_theta, k_ctrl = jax.random.split(key, 4)
    params = init_params(k_param, dim_theta, control_dim, hidden_dim)

    # Tolerance relaxed vs the f32 reference because matmul operands are bf16
    # (f32 accumulation); observed error is O(1e-3) at these magnitudes.
    ATOL = RTOL = 2e-2

    # Main test: small batch, multiple of 8.
    B = 8
    t = jax.random.uniform(k_t, (B,), jnp.float32)
    theta_hat = jax.random.normal(k_theta, (B, dim_theta), jnp.float32)
    control = jax.random.normal(k_ctrl, (B, control_dim), jnp.float32)

    y = blackbox_refinement_net(t, theta_hat, control, params)
    y = jax.block_until_ready(y)
    y_ref = _reference(t, theta_hat, control, params)
    assert y.shape == (B, dim_theta)
    assert jnp.allclose(y, y_ref, atol=ATOL, rtol=RTOL)

    # Secondary test: batch not a multiple of 8 (exercises padding + multi-tile grid).
    B2 = 37
    k2t, k2th, k2c = jax.random.split(jax.random.PRNGKey(1), 3)
    t2 = jax.random.uniform(k2t, (B2,), jnp.float32)
    th2 = jax.random.normal(k2th, (B2, dim_theta), jnp.float32)
    c2 = jax.random.normal(k2c, (B2, control_dim), jnp.float32)
    y2 = jax.block_until_ready(blackbox_refinement_net(t2, th2, c2, params))
    y2_ref = _reference(t2, th2, c2, params)
    assert y2.shape == (B2, dim_theta)
    assert jnp.allclose(y2, y2_ref, atol=ATOL, rtol=RTOL)

    print("KERNEL_OK")
</pallas_src>

<mosaic_0001>
module attributes {stable_mosaic.version = 11 : i64} {
  func.func @_mlp_kernel(%arg0: i32, %arg1: memref<8x1xf32, #tpu.memory_space<vmem>>, %arg2: memref<8x20xf32, #tpu.memory_space<vmem>>, %arg3: memref<1x128xf32, #tpu.memory_space<vmem>>, %arg4: memref<20x128xbf16, #tpu.memory_space<vmem>>, %arg5: memref<1x128xf32, #tpu.memory_space<vmem>>, %arg6: memref<128x128xbf16, #tpu.memory_space<vmem>>, %arg7: memref<1x128xf32, #tpu.memory_space<vmem>>, %arg8: memref<128x128xbf16, #tpu.memory_space<vmem>>, %arg9: memref<1x4xf32, #tpu.memory_space<vmem>>, %arg10: memref<8x4xf32, #tpu.memory_space<vmem>>) attributes {dimension_semantics = [#tpu.dimension_semantics<parallel>], iteration_bounds = array<i64: 1>, scalar_prefetch = 0 : i64, scratch_operands = 0 : i64, tpu.core_type = #tpu.core_type<tc>, window_params = [{transform_indices = @transform_0, window_bounds = array<i64: 8, 1>}, {transform_indices = @transform_1, window_bounds = array<i64: 8, 20>}, {pipeline_mode = #tpu.pipeline_mode<synchronous>, transform_indices = @transform_2, window_bounds = array<i64: 1, 128>}, {pipeline_mode = #tpu.pipeline_mode<synchronous>, transform_indices = @transform_3, window_bounds = array<i64: 20, 128>}, {pipeline_mode = #tpu.pipeline_mode<synchronous>, transform_indices = @transform_4, window_bounds = array<i64: 1, 128>}, {pipeline_mode = #tpu.pipeline_mode<synchronous>, transform_indices = @transform_5, window_bounds = array<i64: 128, 128>}, {pipeline_mode = #tpu.pipeline_mode<synchronous>, transform_indices = @transform_6, window_bounds = array<i64: 1, 128>}, {pipeline_mode = #tpu.pipeline_mode<synchronous>, transform_indices = @transform_7, window_bounds = array<i64: 128, 128>}, {pipeline_mode = #tpu.pipeline_mode<synchronous>, transform_indices = @transform_8, window_bounds = array<i64: 1, 4>}, {transform_indices = @transform_9, window_bounds = array<i64: 8, 4>}]} {
    %c0 = arith.constant 0 : index
    %c0_0 = arith.constant 0 : index
    %0 = vector.load %arg1[%c0, %c0_0] : memref<8x1xf32, #tpu.memory_space<vmem>>, vector<8x1xf32>
    %c0_1 = arith.constant 0 : index
    %c0_2 = arith.constant 0 : index
    %1 = vector.load %arg3[%c0_1, %c0_2] : memref<1x128xf32, #tpu.memory_space<vmem>>, vector<1x128xf32>
    %2 = vector.broadcast %0 : vector<8x1xf32> to vector<8x128xf32>
    %3 = vector.broadcast %1 : vector<1x128xf32> to vector<8x128xf32>
    %4 = arith.mulf %2, %3 : vector<8x128xf32>
    %c0_3 = arith.constant 0 : index
    %c0_4 = arith.constant 0 : index
    %5 = vector.load %arg2[%c0_3, %c0_4] : memref<8x20xf32, #tpu.memory_space<vmem>>, vector<8x20xf32>
    %6 = arith.truncf %5 : vector<8x20xf32> to vector<8x20xbf16>
    %c0_5 = arith.constant 0 : index
    %c0_6 = arith.constant 0 : index
    %7 = vector.load %arg4[%c0_5, %c0_6] : memref<20x128xbf16, #tpu.memory_space<vmem>>, vector<20x128xbf16>
    %cst = arith.constant dense<0.000000e+00> : vector<8x128xf32>
    %8 = tpu.matmul %6, %7, %cst {dimension_numbers = #tpu.dot_dimension_numbers<[1], [0], [0], [1], [0, 0, 1, 1], [], []>} : vector<8x20xbf16>, vector<20x128xbf16>, vector<8x128xf32> -> vector<8x128xf32>
    %9 = arith.addf %4, %8 : vector<8x128xf32>
    %c0_7 = arith.constant 0 : index
    %c0_8 = arith.constant 0 : index
    %10 = vector.load %arg5[%c0_7, %c0_8] : memref<1x128xf32, #tpu.memory_space<vmem>>, vector<1x128xf32>
    %11 = vector.broadcast %10 : vector<1x128xf32> to vector<8x128xf32>
    %12 = arith.addf %9, %11 : vector<8x128xf32>
    %cst_9 = arith.constant 0.000000e+00 : f32
    %13 = vector.broadcast %cst_9 : f32 to vector<8x128xf32>
    %14 = arith.maximumf %12, %13 : vector<8x128xf32>
    %15 = arith.truncf %14 : vector<8x128xf32> to vector<8x128xbf16>
    %c0_10 = arith.constant 0 : index
    %c0_11 = arith.constant 0 : index
    %16 = vector.load %arg6[%c0_10, %c0_11] : memref<128x128xbf16, #tpu.memory_space<vmem>>, vector<128x128xbf16>
    %cst_12 = arith.constant dense<0.000000e+00> : vector<8x128xf32>
    %17 = tpu.matmul %15, %16, %cst_12 {dimension_numbers = #tpu.dot_dimension_numbers<[1], [0], [0], [1], [0, 0, 1, 1], [], []>} : vector<8x128xbf16>, vector<128x128xbf16>, vector<8x128xf32> -> vector<8x128xf32>
    %c0_13 = arith.constant 0 : index
    %c0_14 = arith.constant 0 : index
    %18 = vector.load %arg7[%c0_13, %c0_14] : memref<1x128xf32, #tpu.memory_space<vmem>>, vector<1x128xf32>
    %19 = vector.broadcast %18 : vector<1x128xf32> to vector<8x128xf32>
    %20 = arith.addf %17, %19 : vector<8x128xf32>
    %cst_15 = arith.constant 0.000000e+00 : f32
    %21 = vector.broadcast %cst_15 : f32 to vector<8x128xf32>
    %22 = arith.maximumf %20, %21 : vector<8x128xf32>
    %23 = arith.truncf %22 : vector<8x128xf32> to vector<8x128xbf16>
    %c0_16 = arith.constant 0 : index
    %c0_17 = arith.constant 0 : index
    %24 = vector.load %arg8[%c0_16, %c0_17] : memref<128x128xbf16, #tpu.memory_space<vmem>>, vector<128x128xbf16>
    %cst_18 = arith.constant dense<0.000000e+00> : vector<8x128xf32>
    %25 = tpu.matmul %23, %24, %cst_18 {dimension_numbers = #tpu.dot_dimension_numbers<[1], [0], [0], [1], [0, 0, 1, 1], [], []>} : vector<8x128xbf16>, vector<128x128xbf16>, vector<8x128xf32> -> vector<8x128xf32>
    %26 = vector.extract_strided_slice %25 {offsets = [0, 0], sizes = [8, 4], strides = [1, 1]} : vector<8x128xf32> to vector<8x4xf32>
    %c0_19 = arith.constant 0 : index
    %c0_20 = arith.constant 0 : index
    %27 = vector.load %arg9[%c0_19, %c0_20] : memref<1x4xf32, #tpu.memory_space<vmem>>, vector<1x4xf32>
    %28 = vector.broadcast %27 : vector<1x4xf32> to vector<8x4xf32>
    %29 = arith.addf %26, %28 : vector<8x4xf32>
    %c0_21 = arith.constant 0 : index
    %c0_22 = arith.constant 0 : index
    %30 = vector.load %arg10[%c0_21, %c0_22] : memref<8x4xf32, #tpu.memory_space<vmem>>, vector<8x4xf32>
    tpu.vector_store %arg10[%c0_21, %c0_22], %29 {strides = array<i32>} : memref<8x4xf32, #tpu.memory_space<vmem>>, vector<8x4xf32>,
    return
  }
  func.func @transform_0(%arg0: i32) -> (i32, i32) {
    %c0_i32 = arith.constant 0 : i32
    %c0_i32_0 = arith.constant 0 : i32
    return %arg0, %c0_i32 : i32, i32
  }
  func.func @transform_1(%arg0: i32) -> (i32, i32) {
    %c0_i32 = arith.constant 0 : i32
    %c0_i32_0 = arith.constant 0 : i32
    return %arg0, %c0_i32 : i32, i32
  }
  func.func @transform_2(%arg0: i32) -> (i32, i32) {
    %c0_i32 = arith.constant 0 : i32
    %c0_i32_0 = arith.constant 0 : i32
    %c0_i32_1 = arith.constant 0 : i32
    return %c0_i32, %c0_i32_0 : i32, i32
  }
  func.func @transform_3(%arg0: i32) -> (i32, i32) {
    %c0_i32 = arith.constant 0 : i32
    %c0_i32_0 = arith.constant 0 : i32
    %c0_i32_1 = arith.constant 0 : i32
    return %c0_i32, %c0_i32_0 : i32, i32
  }
  func.func @transform_4(%arg0: i32) -> (i32, i32) {
    %c0_i32 = arith.constant 0 : i32
    %c0_i32_0 = arith.constant 0 : i32
    %c0_i32_1 = arith.constant 0 : i32
    return %c0_i32, %c0_i32_0 : i32, i32
  }
  func.func @transform_5(%arg0: i32) -> (i32, i32) {
    %c0_i32 = arith.constant 0 : i32
    %c0_i32_0 = arith.constant 0 : i32
    %c0_i32_1 = arith.constant 0 : i32
    return %c0_i32, %c0_i32_0 : i32, i32
  }
  func.func @transform_6(%arg0: i32) -> (i32, i32) {
    %c0_i32 = arith.constant 0 : i32
    %c0_i32_0 = arith.constant 0 : i32
    %c0_i32_1 = arith.constant 0 : i32
    return %c0_i32, %c0_i32_0 : i32, i32
  }
  func.func @transform_7(%arg0: i32) -> (i32, i32) {
    %c0_i32 = arith.constant 0 : i32
    %c0_i32_0 = arith.constant 0 : i32
    %c0_i32_1 = arith.constant 0 : i32
    return %c0_i32, %c0_i32_0 : i32, i32
  }
  func.func @transform_8(%arg0: i32) -> (i32, i32) {
    %c0_i32 = arith.constant 0 : i32
    %c0_i32_0 = arith.constant 0 : i32
    %c0_i32_1 = arith.constant 0 : i32
    return %c0_i32, %c0_i32_0 : i32, i32
  }
  func.func @transform_9(%arg0: i32) -> (i32, i32) {
    %c0_i32 = arith.constant 0 : i32
    %c0_i32_0 = arith.constant 0 : i32
    return %arg0, %c0_i32 : i32, i32
  }
}

</mosaic_0001>

<llo_original>
// kernel: tpu_custom_call.1
$region0: #{tpu_custom_call.1}
  #allocation0 [shape = 'u32[]', space=smem, size = 0x4, offset = 0x4, fixed_abs, tag = 'smem constant byte address 0x4 - core index']
  #allocation1 [shape = 'u32[144,128]{1,0:T(1,128)}', space=vmem, size = 0x12000, scoped, tag = 'internal scratch']
  %s0 = inlined_call_operand.vmem [shape: f32[8,1], index: 0, kind: input, shape index: {}]
  %s1 = inlined_call_operand.vmem [shape: f32[8,20], index: 1, kind: input, shape index: {}]
  %s2 = inlined_call_operand.hbm [shape: f32[1,128], index: 2, kind: input, shape index: {}]
  %s3 = inlined_call_operand.vmem [shape: bf16[20,128], index: 3, kind: input, shape index: {}]
  %s4 = inlined_call_operand.vmem [shape: f32[1,128], index: 4, kind: input, shape index: {}]
  %s5 = inlined_call_operand.hbm [shape: bf16[128,128], index: 5, kind: input, shape index: {}]
  %s6 = inlined_call_operand.vmem [shape: f32[1,128], index: 6, kind: input, shape index: {}]
  %s7 = inlined_call_operand.hbm [shape: bf16[128,128], index: 7, kind: input, shape index: {}]
  %s8 = inlined_call_operand.vmem [shape: f32[1,4], index: 8, kind: input, shape index: {}]
  %s9 = inlined_call_operand.vmem [shape: f32[8,4], index: 9, kind: output, shape index: {}]
  %s10 = sld [smem:[#allocation0]]
  $region58: #{tpu_custom_call.1} parent=0
    _
  %s12 = ssub.s32 1, %s10
  %s13 = scalar_select 0, %s12, %s10
  $region1: #{tpu_custom_call.1} parent=0
    #allocation2 [shape = 'u8[512]{0}', space=vmem, size = 0x400, scoped, tag = 'input window, operand 2, single buffered']
    #allocation3 [shape = 's32[1]{0}', space=sflag, size = 0x4, scoped, tag = 'scoped memory for tpu_custom_call.1']
    #allocation4 [shape = 'u8[32768]{0}', space=vmem, size = 0x8000, scoped, tag = 'input window, operand 5, single buffered']
    #allocation5 [shape = 's32[1]{0}', space=sflag, size = 0x4, scoped, tag = 'scoped memory for tpu_custom_call.1']
    #allocation6 [shape = 'u8[32768]{0}', space=vmem, size = 0x8000, scoped, tag = 'input window, operand 7, single buffered']
    %14 = vsyncpa [#allocation3], 0
    %15 = vsyncpa [#allocation5], 0
    // Predicated region
    $region2: #{tpu_custom_call.1} parent=1 // pred_check
      _
    $region3: #{tpu_custom_call.1} parent=1 // pred_check_branch
      %17 = sbr.rel (0) target = $region5
    $region4: #{tpu_custom_call.1} parent=1 // pred_region
      _
    $region5: #{tpu_custom_call.1} parent=1 // pred_fallthru
      _
    // Predicated region
    $region6: #{tpu_custom_call.1} parent=1 // pred_check
      _
    $region7: #{tpu_custom_call.1} parent=1 // pred_check_branch
      %19 = sbr.rel (0) target = $region9
    $region8: #{tpu_custom_call.1} parent=1 // pred_region
      _
    $region9: #{tpu_custom_call.1} parent=1 // pred_fallthru
      _
    // Predicated region
    $region10: #{tpu_custom_call.1} parent=1 // pred_check
      _
    $region11: #{tpu_custom_call.1} parent=1 // pred_check_branch
      %21 = sbr.rel (0) target = $region13
    $region12: #{tpu_custom_call.1} parent=1 // pred_region
      %s23 = ssub.s32 16, 16
      %24 = vsyncadd [#allocation3], %s23
      %s26 = sshll.u32 [#allocation2], 4
      %s27 = int_to_ptr.vmem [resolvable:$true] %s26
      %29 = dma.hbm_to_vmem [thread:$0]  %s2, 16, %s27, [#allocation3]
    $region13: #{tpu_custom_call.1} parent=1 // pred_fallthru
      _
    // Predicated region
    $region14: #{tpu_custom_call.1} parent=1 // pred_check
      _
    $region15: #{tpu_custom_call.1} parent=1 // pred_check_branch
      %31 = sbr.rel (0) target = $region17
    $region16: #{tpu_custom_call.1} parent=1 // pred_region
      _
    $region17: #{tpu_custom_call.1} parent=1 // pred_fallthru
      _
    // Predicated region
    $region18: #{tpu_custom_call.1} parent=1 // pred_check
      _
    $region19: #{tpu_custom_call.1} parent=1 // pred_check_branch
      %33 = sbr.rel (0) target = $region21
    $region20: #{tpu_custom_call.1} parent=1 // pred_region
      _
    $region21: #{tpu_custom_call.1} parent=1 // pred_fallthru
      _
    // Predicated region
    $region22: #{tpu_custom_call.1} parent=1 // pred_check
      _
    $region23: #{tpu_custom_call.1} parent=1 // pred_check_branch
      %35 = sbr.rel (0) target = $region25
    $region24: #{tpu_custom_call.1} parent=1 // pred_region
      %s37 = ssub.s32 1024, 1024
      %38 = vsyncadd [#allocation5], %s37
      %s39 = sshll.u32 [#allocation4], 4
      %s40 = int_to_ptr.vmem [resolvable:$true] %s39
      %45 = dma.hbm_to_vmem [thread:$0]  %s5, 1024, %s40, [#allocation5], 64, 64, 4
    $region25: #{tpu_custom_call.1} parent=1 // pred_fallthru
      _
    // Predicated region
    $region26: #{tpu_custom_call.1} parent=1 // pred_check
      _
    $region27: #{tpu_custom_call.1} parent=1 // pred_check_branch
      %47 = sbr.rel (0) target = $region29
    $region28: #{tpu_custom_call.1} parent=1 // pred_region
      _
    $region29: #{tpu_custom_call.1} parent=1 // pred_fallthru
      _
    // Predicated region
    $region30: #{tpu_custom_call.1} parent=1 // pred_check
      _
    $region31: #{tpu_custom_call.1} parent=1 // pred_check_branch
      %49 = sbr.rel (0) target = $region33
    $region32: #{tpu_custom_call.1} parent=1 // pred_region
      %s51 = ssub.s32 1024, 1024
      %52 = vsyncadd [#allocation5], %s51
      %s53 = sshll.u32 [#allocation6], 4
      %s54 = int_to_ptr.vmem [resolvable:$true] %s53
      %59 = dma.hbm_to_vmem [thread:$0]  %s7, 1024, %s54, [#allocation5], 64, 64, 4
    $region33: #{tpu_custom_call.1} parent=1 // pred_fallthru
      _
    // Predicated region
    $region34: #{tpu_custom_call.1} parent=1 // pred_check
      _
    $region35: #{tpu_custom_call.1} parent=1 // pred_check_branch
      %61 = sbr.rel (0) target = $region37
    $region36: #{tpu_custom_call.1} parent=1 // pred_region
      _
    $region37: #{tpu_custom_call.1} parent=1 // pred_fallthru
      _
    // Predicated region
    $region38: #{tpu_custom_call.1} parent=1 // pred_check
      _
    $region39: #{tpu_custom_call.1} parent=1 // pred_check_branch
      %63 = sbr.rel (0) target = $region41
    $region40: #{tpu_custom_call.1} parent=1 // pred_region
      %64 = dma.done [#allocation3], 16
    $region41: #{tpu_custom_call.1} parent=1 // pred_fallthru
      _
    // Predicated region
    $region42: #{tpu_custom_call.1} parent=1 // pred_check
      _
    $region43: #{tpu_custom_call.1} parent=1 // pred_check_branch
      %66 = sbr.rel (0) target = $region45
    $region44: #{tpu_custom_call.1} parent=1 // pred_region
      %67 = dma.done [#allocation5], 1024
    $region45: #{tpu_custom_call.1} parent=1 // pred_fallthru
      _
    // Predicated region
    $region46: #{tpu_custom_call.1} parent=1 // pred_check
      _
    $region47: #{tpu_custom_call.1} parent=1 // pred_check_branch
      %69 = sbr.rel (0) target = $region49
    $region48: #{tpu_custom_call.1} parent=1 // pred_region
      %70 = dma.done [#allocation5], 1024
    $region49: #{tpu_custom_call.1} parent=1 // pred_fallthru
      _
    %v72 = vld [vmem:[%s0] sm:$0xff]
    %v73 = vld [vmem:[#allocation2] sm:$0x1]
    %75 = vset.pattern.permute.xlu0 0
    %76 = vperm.xlu0 %75, %v72
    %v77 = vpop.permute.xlu0 %76
    %v80 = vlaneseq
    %v81 = vshrl.u32 %v80, 7
    %v82 = vsub.s32 0, %v81
    %v83 = vrot.slane %v73, %v82
    %v85 = vmul.f32 %v77, %v83
    %v86 = vld [vmem:[%s1] sm:$0xff]
    %v87 = vpack.c.bf16 %v86, %v86
    %v88 = vld [vmem:[%s3] sm:$0xf]
    %v89 = vld [vmem:[%s3 + $0x4] sm:$0xf]
    %v90 = vld [vmem:[%s3 + $0x8] sm:$0x3]
    %v94 = vunpack.c.l.b16 %v88
    %v95 = vunpack.c.l.b16 %v89
    %v96 = vunpack.c.l.b16 %v90
    %v97 = vpack.c.b16 %v95, %v94
    %v98 = vpack.c.b16 %v96, %v96
    %vm100 = vcmask 162816
    %v102 = vsel %vm100, %v87, 0
    %vm104 = vcmask 1041408
    %v106 = vsel %vm104, %v98, 0
    %108 = vmatprep.subr.bf16.mxu0 0
    %109 = vmatpush1.bf16.msra.mxu0 %v97
    %110 = vmatprep.subr.bf16.mxu0 0
    %111 = vmatpush1.bf16.msra.mxu0 %v106
    %112 = vmatprep.subr.bf16.mxu0 0
    %113 = vmatpush1.bf16.msra.mxu0 0
    %114 = vmatprep.subr.bf16.mxu0 0
    %115 = vmatpush1.bf16.msra.mxu0 0
    %116 = vmatprep.subr.bf16.mxu0 0
    %117 = vmatpush1.bf16.msra.mxu0 0
    %118 = vmatprep.subr.bf16.mxu0 0
    %119 = vmatpush1.bf16.msra.mxu0 0
    %120 = vmatprep.subr.bf16.mxu0 0
    %121 = vmatpush1.bf16.msra.mxu0 0
    %122 = vmatprep.subr.bf16.mxu0 0
    %123 = vmatpush1.bf16.msra.mxu0 0
    %124 = vmatprep.subr.bf16.mxu0 0
    %125 = vmatpush1.bf16.msra.mxu0 0
    %126 = vmatprep.subr.bf16.mxu0 0
    %127 = vmatpush1.bf16.msra.mxu0 0
    %128 = vmatprep.subr.bf16.mxu0 0
    %129 = vmatpush1.bf16.msra.mxu0 0
    %130 = vmatprep.subr.bf16.mxu0 0
    %131 = vmatpush1.bf16.msra.mxu0 0
    %132 = vmatprep.subr.bf16.mxu0 0
    %133 = vmatpush1.bf16.msra.mxu0 0
    %134 = vmatprep.subr.bf16.mxu0 0
    %135 = vmatpush1.bf16.msra.mxu0 0
    %136 = vmatprep.subr.bf16.mxu0 0
    %137 = vmatpush1.bf16.msra.mxu0 0
    %138 = vmatprep.subr.bf16.mxu0 0
    %139 = vmatpush1.bf16.msra.mxu0 0
    %140 = vmatprep.mubr.bf16.mxu0 0
    %141 = vmatmul.mubr.bf16.gmra.mrb[0].mxu0 %v102
    %v142 = vpop.f32.mrb[0].mxu0
    %v143 = vadd.f32 0.0, %v142
    %v144 = vpop.f32.mrb[0].mxu0
    %v145 = vpop.f32.mrb[0].mxu0
    %v146 = vpop.f32.mrb[0].mxu0
    %147 = vdwg.mxu0
    %v148 = vadd.f32 %v85, %v143
    %v149 = vld [vmem:[%s4] sm:$0x1]
    %v151 = vlaneseq
    %v152 = vshrl.u32 %v151, 7
    %v153 = vsub.s32 0, %v152
    %v154 = vrot.slane %v149, %v153
    %v156 = vadd.f32 %v148, %v154
    %v157 = vmax.f32 %v156, 0.0
    %v158 = vpack.c.bf16 %v157, %v157
    %v159 = vld [vmem:[#allocation4] sm:$0xf]
    %v160 = vld [vmem:[#allocation4 + $0x4] sm:$0xf]
    %v161 = vld [vmem:[#allocation4 + $0x8] sm:$0xf]
    %v162 = vld [vmem:[#allocation4 + $0xc] sm:$0xf]
    %v163 = vld [vmem:[#allocation4 + $0x10] sm:$0xf]
    %v164 = vld [vmem:[#allocation4 + $0x14] sm:$0xf]
    %v165 = vld [vmem:[#allocation4 + $0x18] sm:$0xf]
    %v166 = vld [vmem:[#allocation4 + $0x1c] sm:$0xf]
    %v167 = vld [vmem:[#allocation4 + $0x20] sm:$0xf]
    %v168 = vld [vmem:[#allocation4 + $0x24] sm:$0xf]
    %v169 = vld [vmem:[#allocation4 + $0x28] sm:$0xf]
    %v170 = vld [vmem:[#allocation4 + $0x2c] sm:$0xf]
    %v171 = vld [vmem:[#allocation4 + $0x30] sm:$0xf]
    %v172 = vld [vmem:[#allocation4 + $0x34] sm:$0xf]
    %v173 = vld [vmem:[#allocation4 + $0x38] sm:$0xf]
    %v174 = vld [vmem:[#allocation4 + $0x3c] sm:$0xf]
    %v175 = vld [vmem:[%s6] sm:$0x1]
    %v177 = vlaneseq
    %v178 = vshrl.u32 %v177, 7
    %v179 = vsub.s32 0, %v178
    %v180 = vrot.slane %v175, %v179
    %v198 = vunpack.c.l.b16 %v159
    %v199 = vunpack.c.l.b16 %v160
    %v200 = vunpack.c.l.b16 %v161
    %v201 = vunpack.c.l.b16 %v162
    %v202 = vunpack.c.l.b16 %v163
    %v203 = vunpack.c.l.b16 %v164
    %v204 = vunpack.c.l.b16 %v165
    %v205 = vunpack.c.l.b16 %v166
    %v206 = vunpack.c.l.b16 %v167
    %v207 = vunpack.c.l.b16 %v168
    %v208 = vunpack.c.l.b16 %v169
    %v209 = vunpack.c.l.b16 %v170
    %v210 = vunpack.c.l.b16 %v171
    %v211 = vunpack.c.l.b16 %v172
    %v212 = vunpack.c.l.b16 %v173
    %v213 = vunpack.c.l.b16 %v174
    %v214 = vpack.c.b16 %v199, %v198
    %v215 = vpack.c.b16 %v201, %v200
    %v216 = vpack.c.b16 %v203, %v202
    %v217 = vpack.c.b16 %v205, %v204
    %v218 = vpack.c.b16 %v207, %v206
    %v219 = vpack.c.b16 %v209, %v208
    %v220 = vpack.c.b16 %v211, %v210
    %v221 = vpack.c.b16 %v213, %v212
    %230 = vmatprep.subr.bf16.mxu0 0
    %231 = vmatpush1.bf16.msra.mxu0 %v214
    %232 = vmatprep.subr.bf16.mxu0 0
    %233 = vmatpush1.bf16.msra.mxu0 %v215
    %234 = vmatprep.subr.bf16.mxu0 0
    %235 = vmatpush1.bf16.msra.mxu0 %v216
    %236 = vmatprep.subr.bf16.mxu0 0
    %237 = vmatpush1.bf16.msra.mxu0 %v217
    %238 = vmatprep.subr.bf16.mxu0 0
    %239 = vmatpush1.bf16.msra.mxu0 %v218
    %240 = vmatprep.subr.bf16.mxu0 0
    %241 = vmatpush1.bf16.msra.mxu0 %v219
    %242 = vmatprep.subr.bf16.mxu0 0
    %243 = vmatpush1.bf16.msra.mxu0 %v220
    %244 = vmatprep.subr.bf16.mxu0 0
    %245 = vmatpush1.bf16.msra.mxu0 %v221
    %246 = vmatprep.subr.bf16.mxu0 0
    %247 = vmatpush1.bf16.msra.mxu0 0
    %248 = vmatprep.subr.bf16.mxu0 0
    %249 = vmatpush1.bf16.msra.mxu0 0
    %250 = vmatprep.subr.bf16.mxu0 0
    %251 = vmatpush1.bf16.msra.mxu0 0
    %252 = vmatprep.subr.bf16.mxu0 0
    %253 = vmatpush1.bf16.msra.mxu0 0
    %254 = vmatprep.subr.bf16.mxu0 0
    %255 = vmatpush1.bf16.msra.mxu0 0
    %256 = vmatprep.subr.bf16.mxu0 0
    %257 = vmatpush1.bf16.msra.mxu0 0
    %258 = vmatprep.subr.bf16.mxu0 0
    %259 = vmatpush1.bf16.msra.mxu0 0
    %260 = vmatprep.subr.bf16.mxu0 0
    %261 = vmatpush1.bf16.msra.mxu0 0
    %262 = vmatprep.mubr.bf16.mxu0 0
    %263 = vmatmul.mubr.bf16.gmra.mrb[0].mxu0 %v158
    %v264 = vpop.f32.mrb[0].mxu0
    %v265 = vadd.f32 %v180, %v264
    %v266 = vpop.f32.mrb[0].mxu0
    %v267 = vpop.f32.mrb[0].mxu0
    %v268 = vpop.f32.mrb[0].mxu0
    %269 = vdwg.mxu0
    %v270 = vmax.f32 %v265, 0.0
    %v271 = vpack.c.bf16 %v270, %v270
    %v272 = vld [vmem:[#allocation6] sm:$0xf]
    %v273 = vld [vmem:[#allocation6 + $0x4] sm:$0xf]
    %v274 = vld [vmem:[#allocation6 + $0x8] sm:$0xf]
    %v275 = vld [vmem:[#allocation6 + $0xc] sm:$0xf]
    %v276 = vld [vmem:[#allocation6 + $0x10] sm:$0xf]
    %v277 = vld [vmem:[#allocation6 + $0x14] sm:$0xf]
    %v278 = vld [vmem:[#allocation6 + $0x18] sm:$0xf]
    %v279 = vld [vmem:[#allocation6 + $0x1c] sm:$0xf]
    %v280 = vld [vmem:[#allocation6 + $0x20] sm:$0xf]
    %v281 = vld [vmem:[#allocation6 + $0x24] sm:$0xf]
    %v282 = vld [vmem:[#allocation6 + $0x28] sm:$0xf]
    %v283 = vld [vmem:[#allocation6 + $0x2c] sm:$0xf]
    %v284 = vld [vmem:[#allocation6 + $0x30] sm:$0xf]
    %v285 = vld [vmem:[#allocation6 + $0x34] sm:$0xf]
    %v286 = vld [vmem:[#allocation6 + $0x38] sm:$0xf]
    %v287 = vld [vmem:[#allocation6 + $0x3c] sm:$0xf]
    %v304 = vunpack.c.l.b16 %v272
    %v305 = vunpack.c.l.b16 %v273
    %v306 = vunpack.c.l.b16 %v274
    %v307 = vunpack.c.l.b16 %v275
    %v308 = vunpack.c.l.b16 %v276
    %v309 = vunpack.c.l.b16 %v277
    %v310 = vunpack.c.l.b16 %v278
    %v311 = vunpack.c.l.b16 %v279
    %v312 = vunpack.c.l.b16 %v280
    %v313 = vunpack.c.l.b16 %v281
    %v314 = vunpack.c.l.b16 %v282
    %v315 = vunpack.c.l.b16 %v283
    %v316 = vunpack.c.l.b16 %v284
    %v317 = vunpack.c.l.b16 %v285
    %v318 = vunpack.c.l.b16 %v286
    %v319 = vunpack.c.l.b16 %v287
    %v320 = vpack.c.b16 %v305, %v304
    %v321 = vpack.c.b16 %v307, %v306
    %v322 = vpack.c.b16 %v309, %v308
    %v323 = vpack.c.b16 %v311, %v310
    %v324 = vpack.c.b16 %v313, %v312
    %v325 = vpack.c.b16 %v315, %v314
    %v326 = vpack.c.b16 %v317, %v316
    %v327 = vpack.c.b16 %v319, %v318
    %336 = vmatprep.subr.bf16.mxu0 0
    %337 = vmatpush1.bf16.msra.mxu0 %v320
    %338 = vmatprep.subr.bf16.mxu0 0
    %339 = vmatpush1.bf16.msra.mxu0 %v321
    %340 = vmatprep.subr.bf16.mxu0 0
    %341 = vmatpush1.bf16.msra.mxu0 %v322
    %342 = vmatprep.subr.bf16.mxu0 0
    %343 = vmatpush1.bf16.msra.mxu0 %v323
    %344 = vmatprep.subr.bf16.mxu0 0
    %345 = vmatpush1.bf16.msra.mxu0 %v324
    %346 = vmatprep.subr.bf16.mxu0 0
    %347 = vmatpush1.bf16.msra.mxu0 %v325
    %348 = vmatprep.subr.bf16.mxu0 0
    %349 = vmatpush1.bf16.msra.mxu0 %v326
    %350 = vmatprep.subr.bf16.mxu0 0
    %351 = vmatpush1.bf16.msra.mxu0 %v327
    %352 = vmatprep.subr.bf16.mxu0 0
    %353 = vmatpush1.bf16.msra.mxu0 0
    %354 = vmatprep.subr.bf16.mxu0 0
    %355 = vmatpush1.bf16.msra.mxu0 0
    %356 = vmatprep.subr.bf16.mxu0 0
    %357 = vmatpush1.bf16.msra.mxu0 0
    %358 = vmatprep.subr.bf16.mxu0 0
    %359 = vmatpush1.bf16.msra.mxu0 0
    %360 = vmatprep.subr.bf16.mxu0 0
    %361 = vmatpush1.bf16.msra.mxu0 0
    %362 = vmatprep.subr.bf16.mxu0 0
    %363 = vmatpush1.bf16.msra.mxu0 0
    %364 = vmatprep.subr.bf16.mxu0 0
    %365 = vmatpush1.bf16.msra.mxu0 0
    %366 = vmatprep.subr.bf16.mxu0 0
    %367 = vmatpush1.bf16.msra.mxu0 0
    %368 = vmatprep.mubr.bf16.mxu0 0
    %369 = vmatmul.mubr.bf16.gmra.mrb[0].mxu0 %v271
    %v370 = vpop.f32.mrb[0].mxu0
    %v371 = vadd.f32 0.0, %v370
    %v372 = vpop.f32.mrb[0].mxu0
    %v373 = vpop.f32.mrb[0].mxu0
    %v374 = vpop.f32.mrb[0].mxu0
    %375 = vdwg.mxu0
    %v376 = vld [vmem:[%s8] sm:$0x1]
    %v378 = vlaneseq
    %v379 = vshrl.u32 %v378, 7
    %v380 = vsub.s32 0, %v379
    %v381 = vrot.slane %v376, %v380
    %v383 = vadd.f32 %v371, %v381
    %vm384 = vcmask 31744
    %385 = vst.msk [vmem:[%s9] sm:$0xff] %vm384, %v383
    // Predicated region
    $region50: #{tpu_custom_call.1} parent=1 // pred_check
      _
    $region51: #{tpu_custom_call.1} parent=1 // pred_check_branch
      %387 = sbr.rel (0) target = $region53
    $region52: #{tpu_custom_call.1} parent=1 // pred_region
      _
    $region53: #{tpu_custom_call.1} parent=1 // pred_fallthru
      _
    // Predicated region
    $region54: #{tpu_custom_call.1} parent=1 // pred_check
      _
    $region55: #{tpu_custom_call.1} parent=1 // pred_check_branch
      %389 = sbr.rel (0) target = $region57
    $region56: #{tpu_custom_call.1} parent=1 // pred_region
      _
    $region57: #{tpu_custom_call.1} parent=1 // pred_fallthru
      _
    %390 = vsyncpa [#allocation3], 1
    %391 = vsyncpa [#allocation5], 1

</llo_original>
